<compile_context>
chip_gen: v6e
topology: v6e:2x2x1
jax: 0.10.0
libtpu: 0.0.40
codegen_flags: <defaults>
</compile_context>

<pallas_src>
import jax
import jax.numpy as jnp
import numpy as np
from jax.experimental import pallas as pl
from jax.experimental.pallas import tpu as pltpu

# ------------------------- module hyper-parameters -------------------------
OUP_CHANNELS = 8        # oup_channels
GROUP_NUM = 4           # GroupNorm groups (must divide OUP_CHANNELS)
GATE_T = 0.5            # gate_treshold
EPS = 1e-5              # nn.GroupNorm default eps

H = 16
W = 16

_MAX_BLOCK_N = 256      # up to nb*C*HW*4 = 2 MiB f32 per grid step
_MIN_SPLIT_N = 16       # below this, one block per call (no pointless 2-step)


# ------------------------------- kernel ------------------------------------
def _group_mean_col(col, group_num, inv_n):
    """col: (nb, C, 1) per-channel sums -> (nb, C, 1) per-group means
    broadcast back to every channel of its group.  Operates only on the tiny
    stats column (no full-slab slicing)."""
    nb, C, _ = col.shape
    cs = C // group_num
    pieces = []
    for g in range(group_num):                      # tiny unroll (GROUP_NUM=4)
        gsum = jnp.sum(col[:, g * cs:(g + 1) * cs, :], axis=1, keepdims=True)
        pieces.append(jnp.broadcast_to(gsum * inv_n, (nb, cs, 1)))
    return jnp.concatenate(pieces, axis=1)          # (nb, C, 1)


def _sru_kernel(x_ref, a_ref, b_ref, o_ref):
    nb, C, HW = x_ref.shape
    cs = C // GROUP_NUM
    half = C // 2
    inv_n = 1.0 / (cs * HW)

    x = x_ref[...].astype(jnp.float32)              # (nb, C, HW) lane-dense

    # ---------------- GroupNorm (biased variance, eps=1e-5) -----------------
    # Two lane reduces over the full slab; group fold on the tiny column only.
    s = jnp.sum(x, axis=-1, keepdims=True)          # (nb, C, 1)
    mean = _group_mean_col(s, GROUP_NUM, inv_n)     # (nb, C, 1)
    d = x - mean
    sq = jnp.sum(d * d, axis=-1, keepdims=True)     # (nb, C, 1)
    var = _group_mean_col(sq, GROUP_NUM, inv_n)     # (nb, C, 1)
    norm = d * jax.lax.rsqrt(var + EPS)

    # ---------------- gate: affine & w_gamma folded into (a, b) -------------
    rew = jax.nn.sigmoid(norm * a_ref[...] + b_ref[...])
    mask = rew > GATE_T
    p = rew * x
    x1 = jnp.where(mask, x, p)                      # w1 * x
    x2 = jnp.where(mask, jnp.zeros_like(p), p)      # w2 * x

    # ---------------- reconstruct: cross-half pairing == channel roll -------
    y = x1 + pltpu.roll(x2, shift=half, axis=1)     # XLU sublane rotate

    o_ref[...] = y.astype(o_ref.dtype)              # single full-width store


# ------------------------------ wrapper -------------------------------------
def _pick_block_n(n):
    if n > _MAX_BLOCK_N:
        return _MAX_BLOCK_N
    if n >= _MIN_SPLIT_N:
        return pl.cdiv(n, 2)    # exactly 2 parallel steps -> both v7x TCs
    return n                    # small batch: one block, one step


@jax.jit
def sru_forward(x, gn_w, gn_b):
    N, C, h, w = x.shape
    assert C == OUP_CHANNELS and C % GROUP_NUM == 0 and C % 2 == 0
    HW = h * w

    nb = _pick_block_n(N)
    grid = (pl.cdiv(N, nb),)    # ragged last block is masked on store

    x_flat = x.reshape(N, C, HW)                    # lane-dense layout
    w_gamma = gn_w / jnp.sum(gn_w)
    a = (gn_w * w_gamma).reshape(1, C, 1).astype(jnp.float32)
    b = (gn_b * w_gamma).reshape(1, C, 1).astype(jnp.float32)

    data_spec = pl.BlockSpec((nb, C, HW), lambda n: (n, 0, 0))
    param_spec = pl.BlockSpec((1, C, 1), lambda n: (0, 0, 0))

    out = pl.pallas_call(
        _sru_kernel,
        out_shape=jax.ShapeDtypeStruct((N, C, HW), x.dtype),
        grid=grid,
        in_specs=[data_spec, param_spec, param_spec],
        out_specs=data_spec,
        compiler_params=pltpu.CompilerParams(
            dimension_semantics=("parallel",),
            vmem_limit_bytes=48 * 1024 * 1024),
    )(x_flat, a, b)

    return out.reshape(N, C, h, w)


# ----------------------- pure-JAX reference (for checking) ------------------
def sru_reference(x, gn_w, gn_b):
    N, C, h, w = x.shape
    xr = x.reshape(N, GROUP_NUM, -1)
    mean = xr.mean(axis=2, keepdims=True)
    var = xr.var(axis=2, keepdims=True)                 # biased, as nn.GroupNorm
    gn = ((xr - mean) * jax.lax.rsqrt(var + EPS)).reshape(N, C, h, w)
    gn = gn * gn_w.reshape(1, C, 1, 1) + gn_b.reshape(1, C, 1, 1)
    w_gamma = (gn_w / gn_w.sum()).reshape(1, C, 1, 1)
    rew = jax.nn.sigmoid(gn * w_gamma)
    w1 = jnp.where(rew > GATE_T, 1.0, rew)
    w2 = jnp.where(rew > GATE_T, 0.0, rew)
    x1, x2 = w1 * x, w2 * x
    half = C // 2
    return jnp.concatenate([x1[:, :half] + x2[:, half:],
                            x1[:, half:] + x2[:, :half]], axis=1)


# --------------------------------- main --------------------------------------
if __name__ == "__main__":
    key = jax.random.PRNGKey(0)
    kx, kw, kb = jax.random.split(key, 3)
    x = jax.random.normal(kx, (2, OUP_CHANNELS, H, W), jnp.float32)
    gn_w = jax.random.uniform(kw, (OUP_CHANNELS,), jnp.float32, 0.5, 1.5)
    gn_b = 0.1 * jax.random.normal(kb, (OUP_CHANNELS,), jnp.float32)

    out = sru_forward(x, gn_w, gn_b)
    out = jax.block_until_ready(out)

    ref = sru_reference(x, gn_w, gn_b)
    np.testing.assert_allclose(np.asarray(out), np.asarray(ref),
                               rtol=1e-4, atol=1e-4)
    print("KERNEL_OK")
</pallas_src>

<mosaic_0001>
module attributes {stable_mosaic.version = 11 : i64} {
  func.func @_sru_kernel(%arg0: i32, %arg1: memref<2x8x256xf32, #tpu.memory_space<vmem>>, %arg2: memref<1x8x1xf32, #tpu.memory_space<vmem>>, %arg3: memref<1x8x1xf32, #tpu.memory_space<vmem>>, %arg4: memref<2x8x256xf32, #tpu.memory_space<vmem>>) attributes {dimension_semantics = [#tpu.dimension_semantics<parallel>], iteration_bounds = array<i64: 1>, scalar_prefetch = 0 : i64, scratch_operands = 0 : i64, tpu.core_type = #tpu.core_type<tc>, window_params = [{transform_indices = @transform_0, window_bounds = array<i64: 2, 8, 256>}, {pipeline_mode = #tpu.pipeline_mode<synchronous>, transform_indices = @transform_1, window_bounds = array<i64: 1, 8, 1>}, {pipeline_mode = #tpu.pipeline_mode<synchronous>, transform_indices = @transform_2, window_bounds = array<i64: 1, 8, 1>}, {transform_indices = @transform_3, window_bounds = array<i64: 2, 8, 256>}]} {
    %c0 = arith.constant 0 : index
    %c0_0 = arith.constant 0 : index
    %c0_1 = arith.constant 0 : index
    %0 = vector.load %arg1[%c0, %c0_0, %c0_1] : memref<2x8x256xf32, #tpu.memory_space<vmem>>, vector<2x8x256xf32>
    %cst = arith.constant dense<0.000000e+00> : vector<2x8xf32>
    %1 = vector.multi_reduction <add>, %0, %cst [2] : vector<2x8x256xf32> to vector<2x8xf32>
    %2 = vector.shape_cast %1 : vector<2x8xf32> to vector<2x8x1xf32>
    %3 = vector.extract_strided_slice %2 {offsets = [0, 0, 0], sizes = [2, 2, 1], strides = [1, 1, 1]} : vector<2x8x1xf32> to vector<2x2x1xf32>
    %cst_2 = arith.constant dense<0.000000e+00> : vector<2x1xf32>
    %4 = vector.multi_reduction <add>, %3, %cst_2 [1] : vector<2x2x1xf32> to vector<2x1xf32>
    %5 = vector.shape_cast %4 : vector<2x1xf32> to vector<2x1x1xf32>
    %cst_3 = arith.constant 0.001953125 : f32
    %6 = vector.broadcast %cst_3 : f32 to vector<2x1x1xf32>
    %7 = arith.mulf %5, %6 : vector<2x1x1xf32>
    %8 = vector.shape_cast %7 : vector<2x1x1xf32> to vector<2x1x1xf32>
    %9 = vector.broadcast %8 : vector<2x1x1xf32> to vector<2x2x1xf32>
    %10 = vector.extract_strided_slice %2 {offsets = [0, 2, 0], sizes = [2, 2, 1], strides = [1, 1, 1]} : vector<2x8x1xf32> to vector<2x2x1xf32>
    %cst_4 = arith.constant dense<0.000000e+00> : vector<2x1xf32>
    %11 = vector.multi_reduction <add>, %10, %cst_4 [1] : vector<2x2x1xf32> to vector<2x1xf32>
    %12 = vector.shape_cast %11 : vector<2x1xf32> to vector<2x1x1xf32>
    %cst_5 = arith.constant 0.001953125 : f32
    %13 = vector.broadcast %cst_5 : f32 to vector<2x1x1xf32>
    %14 = arith.mulf %12, %13 : vector<2x1x1xf32>
    %15 = vector.shape_cast %14 : vector<2x1x1xf32> to vector<2x1x1xf32>
    %16 = vector.broadcast %15 : vector<2x1x1xf32> to vector<2x2x1xf32>
    %17 = vector.extract_strided_slice %2 {offsets = [0, 4, 0], sizes = [2, 2, 1], strides = [1, 1, 1]} : vector<2x8x1xf32> to vector<2x2x1xf32>
    %cst_6 = arith.constant dense<0.000000e+00> : vector<2x1xf32>
    %18 = vector.multi_reduction <add>, %17, %cst_6 [1] : vector<2x2x1xf32> to vector<2x1xf32>
    %19 = vector.shape_cast %18 : vector<2x1xf32> to vector<2x1x1xf32>
    %cst_7 = arith.constant 0.001953125 : f32
    %20 = vector.broadcast %cst_7 : f32 to vector<2x1x1xf32>
    %21 = arith.mulf %19, %20 : vector<2x1x1xf32>
    %22 = vector.shape_cast %21 : vector<2x1x1xf32> to vector<2x1x1xf32>
    %23 = vector.broadcast %22 : vector<2x1x1xf32> to vector<2x2x1xf32>
    %24 = vector.extract_strided_slice %2 {offsets = [0, 6, 0], sizes = [2, 2, 1], strides = [1, 1, 1]} : vector<2x8x1xf32> to vector<2x2x1xf32>
    %cst_8 = arith.constant dense<0.000000e+00> : vector<2x1xf32>
    %25 = vector.multi_reduction <add>, %24, %cst_8 [1] : vector<2x2x1xf32> to vector<2x1xf32>
    %26 = vector.shape_cast %25 : vector<2x1xf32> to vector<2x1x1xf32>
    %cst_9 = arith.constant 0.001953125 : f32
    %27 = vector.broadcast %cst_9 : f32 to vector<2x1x1xf32>
    %28 = arith.mulf %26, %27 : vector<2x1x1xf32>
    %29 = vector.shape_cast %28 : vector<2x1x1xf32> to vector<2x1x1xf32>
    %30 = vector.broadcast %29 : vector<2x1x1xf32> to vector<2x2x1xf32>
    %31 = tpu.concatenate %9, %16, %23, %30 in 1 : vector<2x2x1xf32>, vector<2x2x1xf32>, vector<2x2x1xf32>, vector<2x2x1xf32> -> vector<2x8x1xf32>
    %32 = vector.broadcast %31 : vector<2x8x1xf32> to vector<2x8x256xf32>
    %33 = arith.subf %0, %32 : vector<2x8x256xf32>
    %34 = arith.mulf %33, %33 : vector<2x8x256xf32>
    %cst_10 = arith.constant dense<0.000000e+00> : vector<2x8xf32>
    %35 = vector.multi_reduction <add>, %34, %cst_10 [2] : vector<2x8x256xf32> to vector<2x8xf32>
    %36 = vector.shape_cast %35 : vector<2x8xf32> to vector<2x8x1xf32>
    %37 = vector.extract_strided_slice %36 {offsets = [0, 0, 0], sizes = [2, 2, 1], strides = [1, 1, 1]} : vector<2x8x1xf32> to vector<2x2x1xf32>
    %cst_11 = arith.constant dense<0.000000e+00> : vector<2x1xf32>
    %38 = vector.multi_reduction <add>, %37, %cst_11 [1] : vector<2x2x1xf32> to vector<2x1xf32>
    %39 = vector.shape_cast %38 : vector<2x1xf32> to vector<2x1x1xf32>
    %cst_12 = arith.constant 0.001953125 : f32
    %40 = vector.broadcast %cst_12 : f32 to vector<2x1x1xf32>
    %41 = arith.mulf %39, %40 : vector<2x1x1xf32>
    %42 = vector.shape_cast %41 : vector<2x1x1xf32> to vector<2x1x1xf32>
    %43 = vector.broadcast %42 : vector<2x1x1xf32> to vector<2x2x1xf32>
    %44 = vector.extract_strided_slice %36 {offsets = [0, 2, 0], sizes = [2, 2, 1], strides = [1, 1, 1]} : vector<2x8x1xf32> to vector<2x2x1xf32>
    %cst_13 = arith.constant dense<0.000000e+00> : vector<2x1xf32>
    %45 = vector.multi_reduction <add>, %44, %cst_13 [1] : vector<2x2x1xf32> to vector<2x1xf32>
    %46 = vector.shape_cast %45 : vector<2x1xf32> to vector<2x1x1xf32>
    %cst_14 = arith.constant 0.001953125 : f32
    %47 = vector.broadcast %cst_14 : f32 to vector<2x1x1xf32>
    %48 = arith.mulf %46, %47 : vector<2x1x1xf32>
    %49 = vector.shape_cast %48 : vector<2x1x1xf32> to vector<2x1x1xf32>
    %50 = vector.broadcast %49 : vector<2x1x1xf32> to vector<2x2x1xf32>
    %51 = vector.extract_strided_slice %36 {offsets = [0, 4, 0], sizes = [2, 2, 1], strides = [1, 1, 1]} : vector<2x8x1xf32> to vector<2x2x1xf32>
    %cst_15 = arith.constant dense<0.000000e+00> : vector<2x1xf32>
    %52 = vector.multi_reduction <add>, %51, %cst_15 [1] : vector<2x2x1xf32> to vector<2x1xf32>
    %53 = vector.shape_cast %52 : vector<2x1xf32> to vector<2x1x1xf32>
    %cst_16 = arith.constant 0.001953125 : f32
    %54 = vector.broadcast %cst_16 : f32 to vector<2x1x1xf32>
    %55 = arith.mulf %53, %54 : vector<2x1x1xf32>
    %56 = vector.shape_cast %55 : vector<2x1x1xf32> to vector<2x1x1xf32>
    %57 = vector.broadcast %56 : vector<2x1x1xf32> to vector<2x2x1xf32>
    %58 = vector.extract_strided_slice %36 {offsets = [0, 6, 0], sizes = [2, 2, 1], strides = [1, 1, 1]} : vector<2x8x1xf32> to vector<2x2x1xf32>
    %cst_17 = arith.constant dense<0.000000e+00> : vector<2x1xf32>
    %59 = vector.multi_reduction <add>, %58, %cst_17 [1] : vector<2x2x1xf32> to vector<2x1xf32>
    %60 = vector.shape_cast %59 : vector<2x1xf32> to vector<2x1x1xf32>
    %cst_18 = arith.constant 0.001953125 : f32
    %61 = vector.broadcast %cst_18 : f32 to vector<2x1x1xf32>
    %62 = arith.mulf %60, %61 : vector<2x1x1xf32>
    %63 = vector.shape_cast %62 : vector<2x1x1xf32> to vector<2x1x1xf32>
    %64 = vector.broadcast %63 : vector<2x1x1xf32> to vector<2x2x1xf32>
    %65 = tpu.concatenate %43, %50, %57, %64 in 1 : vector<2x2x1xf32>, vector<2x2x1xf32>, vector<2x2x1xf32>, vector<2x2x1xf32> -> vector<2x8x1xf32>
    %cst_19 = arith.constant 9.99999974E-6 : f32
    %66 = vector.broadcast %cst_19 : f32 to vector<2x8x1xf32>
    %67 = arith.addf %65, %66 : vector<2x8x1xf32>
    %68 = math.rsqrt %67 : vector<2x8x1xf32>
    %69 = vector.broadcast %68 : vector<2x8x1xf32> to vector<2x8x256xf32>
    %70 = arith.mulf %33, %69 : vector<2x8x256xf32>
    %c0_20 = arith.constant 0 : index
    %c0_21 = arith.constant 0 : index
    %c0_22 = arith.constant 0 : index
    %71 = vector.load %arg2[%c0_20, %c0_21, %c0_22] : memref<1x8x1xf32, #tpu.memory_space<vmem>>, vector<1x8x1xf32>
    %72 = vector.broadcast %71 : vector<1x8x1xf32> to vector<2x8x256xf32>
    %73 = arith.mulf %70, %72 : vector<2x8x256xf32>
    %c0_23 = arith.constant 0 : index
    %c0_24 = arith.constant 0 : index
    %c0_25 = arith.constant 0 : index
    %74 = vector.load %arg3[%c0_23, %c0_24, %c0_25] : memref<1x8x1xf32, #tpu.memory_space<vmem>>, vector<1x8x1xf32>
    %75 = vector.broadcast %74 : vector<1x8x1xf32> to vector<2x8x256xf32>
    %76 = arith.addf %73, %75 : vector<2x8x256xf32>
    %77 = arith.negf %76 : vector<2x8x256xf32>
    %78 = math.exp %77 : vector<2x8x256xf32>
    %cst_26 = arith.constant 1.000000e+00 : f32
    %79 = vector.broadcast %cst_26 : f32 to vector<2x8x256xf32>
    %80 = arith.addf %79, %78 : vector<2x8x256xf32>
    %81 = arith.divf %79, %80 : vector<2x8x256xf32>
    %cst_27 = arith.constant 5.000000e-01 : f32
    %82 = vector.broadcast %cst_27 : f32 to vector<2x8x256xf32>
    %83 = arith.cmpf ogt, %81, %82 : vector<2x8x256xf32>
    %84 = arith.mulf %81, %0 : vector<2x8x256xf32>
    %85 = arith.select %83, %0, %84 : vector<2x8x256xi1>, vector<2x8x256xf32>
    %cst_28 = arith.constant 0.000000e+00 : f32
    %86 = vector.broadcast %cst_28 : f32 to vector<2x8x256xf32>
    %87 = arith.select %83, %86, %84 : vector<2x8x256xi1>, vector<2x8x256xf32>
    %c4_i32 = arith.constant 4 : i32
    %88 = tpu.dynamic_rotate %87 by %c4_i32 dim 1 : vector<2x8x256xf32>, i32 -> vector<2x8x256xf32>
    %89 = arith.addf %85, %88 : vector<2x8x256xf32>
    %c0_29 = arith.constant 0 : index
    %c0_30 = arith.constant 0 : index
    %c0_31 = arith.constant 0 : index
    %90 = vector.load %arg4[%c0_29, %c0_30, %c0_31] : memref<2x8x256xf32, #tpu.memory_space<vmem>>, vector<2x8x256xf32>
    tpu.vector_store %arg4[%c0_29, %c0_30, %c0_31], %89 {strides = array<i32>} : memref<2x8x256xf32, #tpu.memory_space<vmem>>, vector<2x8x256xf32>,
    return
  }
  func.func @transform_0(%arg0: i32) -> (i32, i32, i32) {
    %c0_i32 = arith.constant 0 : i32
    %c0_i32_0 = arith.constant 0 : i32
    %c0_i32_1 = arith.constant 0 : i32
    return %arg0, %c0_i32, %c0_i32_0 : i32, i32, i32
  }
  func.func @transform_1(%arg0: i32) -> (i32, i32, i32) {
    %c0_i32 = arith.constant 0 : i32
    %c0_i32_0 = arith.constant 0 : i32
    %c0_i32_1 = arith.constant 0 : i32
    %c0_i32_2 = arith.constant 0 : i32
    return %c0_i32, %c0_i32_0, %c0_i32_1 : i32, i32, i32
  }
  func.func @transform_2(%arg0: i32) -> (i32, i32, i32) {
    %c0_i32 = arith.constant 0 : i32
    %c0_i32_0 = arith.constant 0 : i32
    %c0_i32_1 = arith.constant 0 : i32
    %c0_i32_2 = arith.constant 0 : i32
    return %c0_i32, %c0_i32_0, %c0_i32_1 : i32, i32, i32
  }
  func.func @transform_3(%arg0: i32) -> (i32, i32, i32) {
    %c0_i32 = arith.constant 0 : i32
    %c0_i32_0 = arith.constant 0 : i32
    %c0_i32_1 = arith.constant 0 : i32
    return %arg0, %c0_i32, %c0_i32_0 : i32, i32, i32
  }
}

</mosaic_0001>

<llo_original>
// kernel: sru_forward.1
$region0: #{sru_forward.1}
  #allocation0 [shape = 'u32[]', space=smem, size = 0x4, offset = 0x4, fixed_abs, tag = 'smem constant byte address 0x4 - core index']
  #allocation1 [shape = 'u32[144,128]{1,0:T(1,128)}', space=vmem, size = 0x12000, scoped, tag = 'internal scratch']
  %s0 = inlined_call_operand.vmem [shape: f32[2,8,256], index: 0, kind: input, shape index: {}]
  %s1 = inlined_call_operand.vmem [shape: f32[1,8,1], index: 1, kind: input, shape index: {}]
  %s2 = inlined_call_operand.vmem [shape: f32[1,8,1], index: 2, kind: input, shape index: {}]
  %s3 = inlined_call_operand.vmem [shape: f32[2,8,256], index: 3, kind: output, shape index: {}]
  %s4 = sld [smem:[#allocation0]]
  $region22: #{sru_forward.1} parent=0
    _
  %s6 = ssub.s32 1, %s4
  %s7 = scalar_select 0, %s6, %s4
  // Predicated region
  $region2: #{sru_forward.1} parent=0 // pred_check
    _
  $region3: #{sru_forward.1} parent=0 // pred_check_branch
    %9 = sbr.rel (0) target = $region5
  $region4: #{sru_forward.1} parent=0 // pred_region
    _
  $region5: #{sru_forward.1} parent=0 // pred_fallthru
    _
  // Predicated region
  $region6: #{sru_forward.1} parent=0 // pred_check
    _
  $region7: #{sru_forward.1} parent=0 // pred_check_branch
    %11 = sbr.rel (0) target = $region9
  $region8: #{sru_forward.1} parent=0 // pred_region
    _
  $region9: #{sru_forward.1} parent=0 // pred_fallthru
    _
  // Predicated region
  $region10: #{sru_forward.1} parent=0 // pred_check
    _
  $region11: #{sru_forward.1} parent=0 // pred_check_branch
    %13 = sbr.rel (0) target = $region13
  $region12: #{sru_forward.1} parent=0 // pred_region
    _
  $region13: #{sru_forward.1} parent=0 // pred_fallthru
    _
  %v14 = vld [vmem:[%s0] sm:$0xff]
  %v15 = vld [vmem:[%s0 + $0x8] sm:$0xff]
  %v16 = vld [vmem:[%s0 + $0x10] sm:$0xff]
  %v17 = vld [vmem:[%s0 + $0x18] sm:$0xff]
  %v18 = vadd.f32 %v14, %v15
  %19 = vadd.xlane.f32.xlu0 %v18
  %v20 = vpop.xlane.xlu0 %19
  %v21 = vadd.f32 %v16, %v17
  %22 = vadd.xlane.f32.xlu0 %v21
  %v23 = vpop.xlane.xlu0 %22
  %vm24 = vcmask 1041408
  %v25 = vsel %vm24, %v20, 0.0
  %v26 = vrot.slane %v25, 4
  %v27 = vadd.f32 %v25, %v26
  %v28 = vrot.slane %v27, 2
  %v29 = vadd.f32 %v27, %v28
  %v30 = vrot.slane %v29, 1
  %v31 = vadd.f32 %v29, %v30
  %v32 = vsel %vm24, %v23, 0.0
  %v33 = vrot.slane %v32, 4
  %v34 = vadd.f32 %v32, %v33
  %v35 = vrot.slane %v34, 2
  %v36 = vadd.f32 %v34, %v35
  %v37 = vrot.slane %v36, 1
  %v38 = vadd.f32 %v36, %v37
  %v39 = vmul.f32 %v31, 0.001953125
  %v40 = vmul.f32 %v38, 0.001953125
  %v43 = vrot.slane %v20, 2
  %v44 = vrot.slane %v23, 2
  %v47 = vsel %vm24, %v43, 0.0
  %v48 = vrot.slane %v47, 4
  %v49 = vadd.f32 %v47, %v48
  %v50 = vrot.slane %v49, 2
  %v51 = vadd.f32 %v49, %v50
  %v52 = vrot.slane %v51, 1
  %v53 = vadd.f32 %v51, %v52
  %v54 = vsel %vm24, %v44, 0.0
  %v55 = vrot.slane %v54, 4
  %v56 = vadd.f32 %v54, %v55
  %v57 = vrot.slane %v56, 2
  %v58 = vadd.f32 %v56, %v57
  %v59 = vrot.slane %v58, 1
  %v60 = vadd.f32 %v58, %v59
  %v61 = vmul.f32 %v53, 0.001953125
  %v62 = vmul.f32 %v60, 0.001953125
  %v63 = vrot.slane %v20, 4
  %v64 = vrot.slane %v23, 4
  %v67 = vsel %vm24, %v63, 0.0
  %v68 = vrot.slane %v67, 4
  %v69 = vadd.f32 %v67, %v68
  %v70 = vrot.slane %v69, 2
  %v71 = vadd.f32 %v69, %v70
  %v72 = vrot.slane %v71, 1
  %v73 = vadd.f32 %v71, %v72
  %v74 = vsel %vm24, %v64, 0.0
  %v75 = vrot.slane %v74, 4
  %v76 = vadd.f32 %v74, %v75
  %v77 = vrot.slane %v76, 2
  %v78 = vadd.f32 %v76, %v77
  %v79 = vrot.slane %v78, 1
  %v80 = vadd.f32 %v78, %v79
  %v81 = vmul.f32 %v73, 0.001953125
  %v82 = vmul.f32 %v80, 0.001953125
  %v83 = vrot.slane %v20, 6
  %v84 = vrot.slane %v23, 6
  %v87 = vsel %vm24, %v83, 0.0
  %v88 = vrot.slane %v87, 4
  %v89 = vadd.f32 %v87, %v88
  %v90 = vrot.slane %v89, 2
  %v91 = vadd.f32 %v89, %v90
  %v92 = vrot.slane %v91, 1
  %v93 = vadd.f32 %v91, %v92
  %v94 = vsel %vm24, %v84, 0.0
  %v95 = vrot.slane %v94, 4
  %v96 = vadd.f32 %v94, %v95
  %v97 = vrot.slane %v96, 2
  %v98 = vadd.f32 %v96, %v97
  %v99 = vrot.slane %v98, 1
  %v100 = vadd.f32 %v98, %v99
  %v101 = vmul.f32 %v93, 0.001953125
  %v102 = vmul.f32 %v100, 0.001953125
  %v103 = vsel %vm24, %v39, %v61
  %v104 = vsel %vm24, %v40, %v62
  %vm105 = vcmask 1043456
  %v106 = vsel %vm105, %v103, %v81
  %v107 = vsel %vm105, %v104, %v82
  %vm108 = vcmask 1045504
  %v109 = vsel %vm108, %v106, %v101
  %v110 = vsel %vm108, %v107, %v102
  %112 = vset.pattern.permute.xlu0 0
  %113 = vperm.xlu0 %112, %v109
  %v114 = vpop.permute.xlu0 %113
  %117 = vset.pattern.permute.xlu0 0
  %118 = vperm.xlu0 %117, %v110
  %v119 = vpop.permute.xlu0 %118
  %v121 = vsub.f32 %v14, %v114
  %v122 = vsub.f32 %v15, %v114
  %v123 = vsub.f32 %v16, %v119
  %v124 = vsub.f32 %v17, %v119
  %v125 = vmul.f32 %v121, %v121
  %v126 = vmul.f32 %v122, %v122
  %v127 = vmul.f32 %v123, %v123
  %v128 = vmul.f32 %v124, %v124
  %v129 = vadd.f32 %v125, %v126
  %130 = vadd.xlane.f32.xlu0 %v129
  %v131 = vpop.xlane.xlu0 %130
  %v132 = vadd.f32 %v127, %v128
  %133 = vadd.xlane.f32.xlu0 %v132
  %v134 = vpop.xlane.xlu0 %133
  %v135 = vsel %vm24, %v131, 0.0
  %v136 = vrot.slane %v135, 4
  %v137 = vadd.f32 %v135, %v136
  %v138 = vrot.slane %v137, 2
  %v139 = vadd.f32 %v137, %v138
  %v140 = vrot.slane %v139, 1
  %v141 = vadd.f32 %v139, %v140
  %v142 = vsel %vm24, %v134, 0.0
  %v143 = vrot.slane %v142, 4
  %v144 = vadd.f32 %v142, %v143
  %v145 = vrot.slane %v144, 2
  %v146 = vadd.f32 %v144, %v145
  %v147 = vrot.slane %v146, 1
  %v148 = vadd.f32 %v146, %v147
  %v149 = vmul.f32 %v141, 0.001953125
  %v150 = vmul.f32 %v148, 0.001953125
  %v153 = vrot.slane %v131, 2
  %v154 = vrot.slane %v134, 2
  %v157 = vsel %vm24, %v153, 0.0
  %v158 = vrot.slane %v157, 4
  %v159 = vadd.f32 %v157, %v158
  %v160 = vrot.slane %v159, 2
  %v161 = vadd.f32 %v159, %v160
  %v162 = vrot.slane %v161, 1
  %v163 = vadd.f32 %v161, %v162
  %v164 = vsel %vm24, %v154, 0.0
  %v165 = vrot.slane %v164, 4
  %v166 = vadd.f32 %v164, %v165
  %v167 = vrot.slane %v166, 2
  %v168 = vadd.f32 %v166, %v167
  %v169 = vrot.slane %v168, 1
  %v170 = vadd.f32 %v168, %v169
  %v171 = vmul.f32 %v163, 0.001953125
  %v172 = vmul.f32 %v170, 0.001953125
  %v173 = vrot.slane %v131, 4
  %v174 = vrot.slane %v134, 4
  %v177 = vsel %vm24, %v173, 0.0
  %v178 = vrot.slane %v177, 4
  %v179 = vadd.f32 %v177, %v178
  %v180 = vrot.slane %v179, 2
  %v181 = vadd.f32 %v179, %v180
  %v182 = vrot.slane %v181, 1
  %v183 = vadd.f32 %v181, %v182
  %v184 = vsel %vm24, %v174, 0.0
  %v185 = vrot.slane %v184, 4
  %v186 = vadd.f32 %v184, %v185
  %v187 = vrot.slane %v186, 2
  %v188 = vadd.f32 %v186, %v187
  %v189 = vrot.slane %v188, 1
  %v190 = vadd.f32 %v188, %v189
  %v191 = vmul.f32 %v183, 0.001953125
  %v192 = vmul.f32 %v190, 0.001953125
  %v193 = vrot.slane %v131, 6
  %v194 = vrot.slane %v134, 6
  %v197 = vsel %vm24, %v193, 0.0
  %v198 = vrot.slane %v197, 4
  %v199 = vadd.f32 %v197, %v198
  %v200 = vrot.slane %v199, 2
  %v201 = vadd.f32 %v199, %v200
  %v202 = vrot.slane %v201, 1
  %v203 = vadd.f32 %v201, %v202
  %v204 = vsel %vm24, %v194, 0.0
  %v205 = vrot.slane %v204, 4
  %v206 = vadd.f32 %v204, %v205
  %v207 = vrot.slane %v206, 2
  %v208 = vadd.f32 %v206, %v207
  %v209 = vrot.slane %v208, 1
  %v210 = vadd.f32 %v208, %v209
  %v211 = vmul.f32 %v203, 0.001953125
  %v212 = vmul.f32 %v210, 0.001953125
  %v213 = vsel %vm24, %v149, %v171
  %v214 = vsel %vm24, %v150, %v172
  %v215 = vsel %vm105, %v213, %v191
  %v216 = vsel %vm105, %v214, %v192
  %v217 = vsel %vm108, %v215, %v211
  %v218 = vsel %vm108, %v216, %v212
  %v219 = vadd.f32 %v217, 1e-05
  %v220 = vadd.f32 %v218, 1e-05
  %v221 = vrsqrt.pop %v219
  %v222 = vrsqrt.pop %v220
  %224 = vset.pattern.permute.xlu0 0
  %225 = vperm.xlu0 %224, %v221
  %v226 = vpop.permute.xlu0 %225
  %229 = vset.pattern.permute.xlu0 0
  %230 = vperm.xlu0 %229, %v222
  %v231 = vpop.permute.xlu0 %230
  %v233 = vmul.f32 %v121, %v226
  %v234 = vmul.f32 %v122, %v226
  %v235 = vmul.f32 %v123, %v231
  %v236 = vmul.f32 %v124, %v231
  %v237 = vld [vmem:[%s1] sm:$0xff]
  %239 = vset.pattern.permute.xlu0 0
  %240 = vperm.xlu0 %239, %v237
  %v241 = vpop.permute.xlu0 %240
  %v243 = vmul.f32 %v233, %v241
  %v244 = vmul.f32 %v234, %v241
  %v245 = vmul.f32 %v235, %v241
  %v246 = vmul.f32 %v236, %v241
  %v247 = vld [vmem:[%s2] sm:$0xff]
  %249 = vset.pattern.permute.xlu0 0
  %250 = vperm.xlu0 %249, %v247
  %v251 = vpop.permute.xlu0 %250
  %v253 = vadd.f32 %v243, %v251
  %v254 = vadd.f32 %v244, %v251
  %v255 = vadd.f32 %v245, %v251
  %v256 = vadd.f32 %v246, %v251
  %v257 = vxor.u32 %v253, 2147483648
  %v258 = vxor.u32 %v254, 2147483648
  %v259 = vxor.u32 %v255, 2147483648
  %v260 = vxor.u32 %v256, 2147483648
  %v261 = vmul.f32 %v257, 1.442695
  %v262 = vpow.pop %v261
  %v263 = vmul.f32 %v258, 1.442695
  %v264 = vpow.pop %v263
  %v265 = vmul.f32 %v259, 1.442695
  %v266 = vpow.pop %v265
  %v267 = vmul.f32 %v260, 1.442695
  %v268 = vpow.pop %v267
  %v269 = vadd.f32 %v262, 1.0
  %v270 = vadd.f32 %v264, 1.0
  %v271 = vadd.f32 %v266, 1.0
  %v272 = vadd.f32 %v268, 1.0
  %v273 = vrcp.pop %v269
  %v274 = vmul.f32 1.0, %v273
  %v275 = vrcp.pop %v270
  %v276 = vmul.f32 1.0, %v275
  %v277 = vrcp.pop %v271
  %v278 = vmul.f32 1.0, %v277
  %v279 = vrcp.pop %v272
  %v280 = vmul.f32 1.0, %v279
  %vm281 = vcmp.gt.f32.partialorder %v274, 0.5
  %vm282 = vcmp.gt.f32.partialorder %v276, 0.5
  %vm283 = vcmp.gt.f32.partialorder %v278, 0.5
  %vm284 = vcmp.gt.f32.partialorder %v280, 0.5
  %v285 = vmul.f32 %v274, %v14
  %v286 = vmul.f32 %v276, %v15
  %v287 = vmul.f32 %v278, %v16
  %v288 = vmul.f32 %v280, %v17
  %v289 = vsel %vm281, %v14, %v285
  %v290 = vsel %vm282, %v15, %v286
  %v291 = vsel %vm283, %v16, %v287
  %v292 = vsel %vm284, %v17, %v288
  %v293 = vsel %vm281, 0.0, %v285
  %v294 = vsel %vm282, 0.0, %v286
  %v295 = vsel %vm283, 0.0, %v287
  %v296 = vsel %vm284, 0.0, %v288
  %v297 = vrot.slane %v293, 4
  %v298 = vrot.slane %v294, 4
  %v299 = vrot.slane %v295, 4
  %v300 = vrot.slane %v296, 4
  %v301 = vadd.f32 %v289, %v297
  %v302 = vadd.f32 %v290, %v298
  %v303 = vadd.f32 %v291, %v299
  %v304 = vadd.f32 %v292, %v300
  %305 = vst [vmem:[%s3] sm:$0xff] %v301
  %306 = vst [vmem:[%s3 + $0x8] sm:$0xff] %v302
  %307 = vst [vmem:[%s3 + $0x10] sm:$0xff] %v303
  %308 = vst [vmem:[%s3 + $0x18] sm:$0xff] %v304
  // Predicated region
  $region14: #{sru_forward.1} parent=0 // pred_check
    _
  $region15: #{sru_forward.1} parent=0 // pred_check_branch
    %310 = sbr.rel (0) target = $region17
  $region16: #{sru_forward.1} parent=0 // pred_region
    _
  $region17: #{sru_forward.1} parent=0 // pred_fallthru
    _
  // Predicated region
  $region18: #{sru_forward.1} parent=0 // pred_check
    _
  $region19: #{sru_forward.1} parent=0 // pred_check_branch
    %312 = sbr.rel (0) target = $region21
  $region20: #{sru_forward.1} parent=0 // pred_region
    _
  $region21: #{sru_forward.1} parent=0 // pred_fallthru
    _

</llo_original>
